<compile_context>
chip_gen: v7x
topology: tpu7x:2x2x1
jax: 0.10.0
libtpu: 0.0.40
codegen_flags: <defaults>
</compile_context>

<pallas_src>
import functools

import jax
import jax.numpy as jnp
from jax.experimental import pallas as pl
from jax.experimental.pallas import tpu as pltpu

HIDDEN1 = 256
HIDDEN2 = 512
LANE = 128


def _round_up(x, m):
    return ((x + m - 1) // m) * m


def mlp_kernel(x_ref, w1_ref, b1_ref, w2_ref, b2_ref, w3_ref, b3_ref, o_ref):
    """Fused 3-layer MLP for one batch tile (all operands resident in VMEM)."""
    # Layer 1: Linear(input_size, 256) + ReLU  (bf16 operands, f32 accumulate)
    x = x_ref[...].astype(jnp.bfloat16)
    h1 = jnp.dot(x, w1_ref[...], preferred_element_type=jnp.float32) + b1_ref[...]
    h1 = jnp.maximum(h1, 0.0)

    # Layer 2: Linear(256, 512) + ReLU
    h2 = jnp.dot(h1.astype(jnp.bfloat16), w2_ref[...],
                 preferred_element_type=jnp.float32) + b2_ref[...]
    h2 = jnp.maximum(h2, 0.0)

    # Dropout(p=0.5): identity at inference time.
    # TODO(synk): training-mode dropout (keep-mask * 2.0) via pltpu.prng_seed /
    # pltpu.prng_random_bits if train-time behavior is ever needed.

    # Layer 3: Linear(512, class_num padded to 128 lanes) — lane-dense store.
    out = jnp.dot(h2.astype(jnp.bfloat16), w3_ref[...],
                  preferred_element_type=jnp.float32) + b3_ref[...]
    o_ref[...] = out.astype(o_ref.dtype)


def prepare_params(w1, b1, w2, b2, w3, b3):
    """One-time parameter formatting (do NOT call per-step).

    Expects weights already in [in_features, out_features] layout (transpose
    PyTorch's [out, in] weights once when importing).  Casts weights to bf16,
    pads the last layer's N to a multiple of 128 lanes, and reshapes biases to
    (1, N) f32 tiles.
    """
    class_num = w3.shape[1]
    n_pad = _round_up(class_num, LANE)
    w3p = jnp.pad(w3, ((0, 0), (0, n_pad - class_num)))
    b3p = jnp.pad(b3, (0, n_pad - class_num))
    return (
        w1.astype(jnp.bfloat16), b1.reshape(1, -1).astype(jnp.float32),
        w2.astype(jnp.bfloat16), b2.reshape(1, -1).astype(jnp.float32),
        w3p.astype(jnp.bfloat16), b3p.reshape(1, -1).astype(jnp.float32),
    )


@functools.partial(jax.jit, static_argnames=("class_num", "block_b"))
def mlp_forward(x, w1, b1, w2, b2, w3p, b3p, *, class_num, block_b=512):
    """x: [B, input_size] f32, params from prepare_params -> [B, class_num] f32."""
    B, in_dim = x.shape
    n_pad = w3p.shape[1]

    # Batch tile: multiple of 8 sublanes, capped at block_b.  For medium
    # single-tile batches, split in two so the "parallel" batch axis gives
    # both v7x TensorCores work (no-op cost on single-TC v5e/v6e).
    bb = min(block_b, _round_up(B, 8))
    if B >= 256 and pl.cdiv(B, bb) == 1:
        bb = _round_up(pl.cdiv(B, 2), 8)
    grid = (pl.cdiv(B, bb),)

    full = lambda i: (0, 0)  # weights/biases: same whole-array block every step

    flops = 2 * B * (in_dim * HIDDEN1 + HIDDEN1 * HIDDEN2 + HIDDEN2 * n_pad)
    bytes_accessed = (
        4 * x.size                                      # f32 activations in
        + 2 * (w1.size + w2.size + w3p.size)            # bf16 weights
        + 4 * (HIDDEN1 + HIDDEN2 + n_pad)               # f32 biases
        + 4 * B * n_pad                                 # f32 output (lane-padded)
    )

    out = pl.pallas_call(
        mlp_kernel,
        out_shape=jax.ShapeDtypeStruct((B, n_pad), jnp.float32),
        grid_spec=pltpu.PrefetchScalarGridSpec(
            num_scalar_prefetch=0,
            grid=grid,
            in_specs=[
                pl.BlockSpec((bb, in_dim), lambda i: (i, 0)),   # x tile (K=64, full dim)
                pl.BlockSpec((in_dim, HIDDEN1), full),          # w1 (bf16)
                pl.BlockSpec((1, HIDDEN1), full),               # b1 (f32)
                pl.BlockSpec((HIDDEN1, HIDDEN2), full),         # w2 (bf16)
                pl.BlockSpec((1, HIDDEN2), full),               # b2 (f32)
                pl.BlockSpec((HIDDEN2, n_pad), full),           # w3 (bf16, N-padded)
                pl.BlockSpec((1, n_pad), full),                 # b3 (f32, N-padded)
            ],
            out_specs=pl.BlockSpec((bb, n_pad), lambda i: (i, 0)),
        ),
        compiler_params=pltpu.CompilerParams(
            dimension_semantics=("parallel",),
        ),
        cost_estimate=pl.CostEstimate(
            flops=flops, transcendentals=0, bytes_accessed=bytes_accessed
        ),
    )(x, w1, b1, w2, b2, w3p, b3p)

    return out[:, :class_num]


def init_linear_params(key, in_features, out_features):
    """Deterministic PyTorch-style nn.Linear init: U(-1/sqrt(in), 1/sqrt(in))."""
    kw, kb = jax.random.split(key)
    bound = 1.0 / (in_features ** 0.5)
    # Stored as [in, out] (transposed vs. PyTorch) — see layout comment above.
    w = jax.random.uniform(kw, (in_features, out_features), jnp.float32,
                           minval=-bound, maxval=bound)
    b = jax.random.uniform(kb, (out_features,), jnp.float32,
                           minval=-bound, maxval=bound)
    return w, b


if __name__ == "__main__":
    key = jax.random.PRNGKey(0)
    k_x, k1, k2, k3 = jax.random.split(key, 4)

    batch = 8
    input_size = 64
    class_num = 2

    x = jax.random.normal(k_x, (batch, input_size), jnp.float32)
    w1, b1 = init_linear_params(k1, input_size, HIDDEN1)
    w2, b2 = init_linear_params(k2, HIDDEN1, HIDDEN2)
    w3, b3 = init_linear_params(k3, HIDDEN2, class_num)

    params = prepare_params(w1, b1, w2, b2, w3, b3)
    out = mlp_forward(x, *params, class_num=class_num)
    out = jax.block_until_ready(out)

    # Pure-JAX f32 reference (eval mode: dropout = identity).  Tolerance is
    # relaxed because the kernel uses bf16 MXU operands (f32 accumulation).
    ref = jnp.maximum(x @ w1 + b1, 0.0)
    ref = jnp.maximum(ref @ w2 + b2, 0.0)
    ref = ref @ w3 + b3
    assert out.shape == (batch, class_num)
    assert jnp.allclose(out, ref, atol=2e-2, rtol=2e-2), (
        f"max abs err {jnp.max(jnp.abs(out - ref))}")

    print("KERNEL_OK")
</pallas_src>

<mosaic_0001>
module attributes {stable_mosaic.version = 11 : i64} {
  func.func @mlp_kernel(%arg0: i32, %arg1: memref<8x64xf32, #tpu.memory_space<vmem>>, %arg2: memref<64x256xbf16, #tpu.memory_space<vmem>>, %arg3: memref<1x256xf32, #tpu.memory_space<vmem>>, %arg4: memref<256x512xbf16, #tpu.memory_space<vmem>>, %arg5: memref<1x512xf32, #tpu.memory_space<vmem>>, %arg6: memref<512x128xbf16, #tpu.memory_space<vmem>>, %arg7: memref<1x128xf32, #tpu.memory_space<vmem>>, %arg8: memref<8x128xf32, #tpu.memory_space<vmem>>) attributes {dimension_semantics = [#tpu.dimension_semantics<parallel>], iteration_bounds = array<i64: 1>, scalar_prefetch = 0 : i64, scratch_operands = 0 : i64, tpu.core_type = #tpu.core_type<tc>, window_params = [{transform_indices = @transform_0, window_bounds = array<i64: 8, 64>}, {pipeline_mode = #tpu.pipeline_mode<synchronous>, transform_indices = @transform_1, window_bounds = array<i64: 64, 256>}, {pipeline_mode = #tpu.pipeline_mode<synchronous>, transform_indices = @transform_2, window_bounds = array<i64: 1, 256>}, {pipeline_mode = #tpu.pipeline_mode<synchronous>, transform_indices = @transform_3, window_bounds = array<i64: 256, 512>}, {pipeline_mode = #tpu.pipeline_mode<synchronous>, transform_indices = @transform_4, window_bounds = array<i64: 1, 512>}, {pipeline_mode = #tpu.pipeline_mode<synchronous>, transform_indices = @transform_5, window_bounds = array<i64: 512, 128>}, {pipeline_mode = #tpu.pipeline_mode<synchronous>, transform_indices = @transform_6, window_bounds = array<i64: 1, 128>}, {transform_indices = @transform_7, window_bounds = array<i64: 8, 128>}]} {
    %c0 = arith.constant 0 : index
    %c0_0 = arith.constant 0 : index
    %0 = vector.load %arg1[%c0, %c0_0] : memref<8x64xf32, #tpu.memory_space<vmem>>, vector<8x64xf32>
    %1 = arith.truncf %0 : vector<8x64xf32> to vector<8x64xbf16>
    %c0_1 = arith.constant 0 : index
    %c0_2 = arith.constant 0 : index
    %2 = vector.load %arg2[%c0_1, %c0_2] : memref<64x256xbf16, #tpu.memory_space<vmem>>, vector<64x256xbf16>
    %cst = arith.constant dense<0.000000e+00> : vector<8x256xf32>
    %3 = tpu.matmul %1, %2, %cst {dimension_numbers = #tpu.dot_dimension_numbers<[1], [0], [0], [1], [0, 0, 1, 1], [], []>} : vector<8x64xbf16>, vector<64x256xbf16>, vector<8x256xf32> -> vector<8x256xf32>
    %c0_3 = arith.constant 0 : index
    %c0_4 = arith.constant 0 : index
    %4 = vector.load %arg3[%c0_3, %c0_4] : memref<1x256xf32, #tpu.memory_space<vmem>>, vector<1x256xf32>
    %5 = vector.broadcast %4 : vector<1x256xf32> to vector<8x256xf32>
    %6 = arith.addf %3, %5 : vector<8x256xf32>
    %cst_5 = arith.constant 0.000000e+00 : f32
    %7 = vector.broadcast %cst_5 : f32 to vector<8x256xf32>
    %8 = arith.maximumf %6, %7 : vector<8x256xf32>
    %9 = arith.truncf %8 : vector<8x256xf32> to vector<8x256xbf16>
    %c0_6 = arith.constant 0 : index
    %c0_7 = arith.constant 0 : index
    %10 = vector.load %arg4[%c0_6, %c0_7] : memref<256x512xbf16, #tpu.memory_space<vmem>>, vector<256x512xbf16>
    %cst_8 = arith.constant dense<0.000000e+00> : vector<8x512xf32>
    %11 = tpu.matmul %9, %10, %cst_8 {dimension_numbers = #tpu.dot_dimension_numbers<[1], [0], [0], [1], [0, 0, 1, 1], [], []>} : vector<8x256xbf16>, vector<256x512xbf16>, vector<8x512xf32> -> vector<8x512xf32>
    %c0_9 = arith.constant 0 : index
    %c0_10 = arith.constant 0 : index
    %12 = vector.load %arg5[%c0_9, %c0_10] : memref<1x512xf32, #tpu.memory_space<vmem>>, vector<1x512xf32>
    %13 = vector.broadcast %12 : vector<1x512xf32> to vector<8x512xf32>
    %14 = arith.addf %11, %13 : vector<8x512xf32>
    %cst_11 = arith.constant 0.000000e+00 : f32
    %15 = vector.broadcast %cst_11 : f32 to vector<8x512xf32>
    %16 = arith.maximumf %14, %15 : vector<8x512xf32>
    %17 = arith.truncf %16 : vector<8x512xf32> to vector<8x512xbf16>
    %c0_12 = arith.constant 0 : index
    %c0_13 = arith.constant 0 : index
    %18 = vector.load %arg6[%c0_12, %c0_13] : memref<512x128xbf16, #tpu.memory_space<vmem>>, vector<512x128xbf16>
    %cst_14 = arith.constant dense<0.000000e+00> : vector<8x128xf32>
    %19 = tpu.matmul %17, %18, %cst_14 {dimension_numbers = #tpu.dot_dimension_numbers<[1], [0], [0], [1], [0, 0, 1, 1], [], []>} : vector<8x512xbf16>, vector<512x128xbf16>, vector<8x128xf32> -> vector<8x128xf32>
    %c0_15 = arith.constant 0 : index
    %c0_16 = arith.constant 0 : index
    %20 = vector.load %arg7[%c0_15, %c0_16] : memref<1x128xf32, #tpu.memory_space<vmem>>, vector<1x128xf32>
    %21 = vector.broadcast %20 : vector<1x128xf32> to vector<8x128xf32>
    %22 = arith.addf %19, %21 : vector<8x128xf32>
    %c0_17 = arith.constant 0 : index
    %c0_18 = arith.constant 0 : index
    %23 = vector.load %arg8[%c0_17, %c0_18] : memref<8x128xf32, #tpu.memory_space<vmem>>, vector<8x128xf32>
    tpu.vector_store %arg8[%c0_17, %c0_18], %22 {strides = array<i32>} : memref<8x128xf32, #tpu.memory_space<vmem>>, vector<8x128xf32>,
    return
  }
  func.func @transform_0(%arg0: i32) -> (i32, i32) {
    %c0_i32 = arith.constant 0 : i32
    %c0_i32_0 = arith.constant 0 : i32
    return %arg0, %c0_i32 : i32, i32
  }
  func.func @transform_1(%arg0: i32) -> (i32, i32) {
    %c0_i32 = arith.constant 0 : i32
    %c0_i32_0 = arith.constant 0 : i32
    %c0_i32_1 = arith.constant 0 : i32
    return %c0_i32, %c0_i32_0 : i32, i32
  }
  func.func @transform_2(%arg0: i32) -> (i32, i32) {
    %c0_i32 = arith.constant 0 : i32
    %c0_i32_0 = arith.constant 0 : i32
    %c0_i32_1 = arith.constant 0 : i32
    return %c0_i32, %c0_i32_0 : i32, i32
  }
  func.func @transform_3(%arg0: i32) -> (i32, i32) {
    %c0_i32 = arith.constant 0 : i32
    %c0_i32_0 = arith.constant 0 : i32
    %c0_i32_1 = arith.constant 0 : i32
    return %c0_i32, %c0_i32_0 : i32, i32
  }
  func.func @transform_4(%arg0: i32) -> (i32, i32) {
    %c0_i32 = arith.constant 0 : i32
    %c0_i32_0 = arith.constant 0 : i32
    %c0_i32_1 = arith.constant 0 : i32
    return %c0_i32, %c0_i32_0 : i32, i32
  }
  func.func @transform_5(%arg0: i32) -> (i32, i32) {
    %c0_i32 = arith.constant 0 : i32
    %c0_i32_0 = arith.constant 0 : i32
    %c0_i32_1 = arith.constant 0 : i32
    return %c0_i32, %c0_i32_0 : i32, i32
  }
  func.func @transform_6(%arg0: i32) -> (i32, i32) {
    %c0_i32 = arith.constant 0 : i32
    %c0_i32_0 = arith.constant 0 : i32
    %c0_i32_1 = arith.constant 0 : i32
    return %c0_i32, %c0_i32_0 : i32, i32
  }
  func.func @transform_7(%arg0: i32) -> (i32, i32) {
    %c0_i32 = arith.constant 0 : i32
    %c0_i32_0 = arith.constant 0 : i32
    return %arg0, %c0_i32 : i32, i32
  }
}

</mosaic_0001>

<llo_original>
// kernel: mlp_forward.1
$region0: #{mlp_forward.1}
  #allocation0 [shape = 'u32[]', space=smem, size = 0x4, offset = 0x4, fixed_abs, tag = 'smem constant byte address 0x4 - core index']
  #allocation1 [shape = 'u32[144,128]{1,0:T(1,128)}', space=vmem, size = 0x12000, scoped, tag = 'internal scratch']
  %s0 = inlined_call_operand.hbm [shape: f32[8,64], index: 0, kind: input, shape index: {}]
  %s1 = inlined_call_operand.hbm [shape: bf16[64,256], index: 1, kind: input, shape index: {}]
  %s2 = inlined_call_operand.vmem [shape: f32[1,256], index: 2, kind: input, shape index: {}]
  %s3 = inlined_call_operand.hbm [shape: bf16[256,512], index: 3, kind: input, shape index: {}]
  %s4 = inlined_call_operand.vmem [shape: f32[1,512], index: 4, kind: input, shape index: {}]
  %s5 = inlined_call_operand.hbm [shape: bf16[512,128], index: 5, kind: input, shape index: {}]
  %s6 = inlined_call_operand.vmem [shape: f32[1,128], index: 6, kind: input, shape index: {}]
  %s7 = inlined_call_operand.vmem [shape: f32[8,128], index: 7, kind: output, shape index: {}]
  %s8 = sld [smem:[#allocation0]]
  $region54: #{mlp_forward.1} parent=0
    _
  %s10 = ssub.s32 1, %s8
  %s11 = scalar_select 0, %s10, %s8
  $region1: #{mlp_forward.1} parent=0
    #allocation2 [shape = 'u8[4096]{0}', space=vmem, size = 0x1000, scoped, tag = 'input window, operand 0, single buffered']
    #allocation3 [shape = 's32[1]{0}', space=sflag, size = 0x4, scoped, tag = 'scoped memory for mlp_forward.1']
    #allocation4 [shape = 'u8[32768]{0}', space=vmem, size = 0x8000, scoped, tag = 'input window, operand 1, single buffered']
    #allocation5 [shape = 's32[1]{0}', space=sflag, size = 0x4, scoped, tag = 'scoped memory for mlp_forward.1']
    #allocation6 [shape = 'u8[262144]{0}', space=vmem, size = 0x40000, scoped, tag = 'input window, operand 3, single buffered']
    #allocation7 [shape = 'u8[131072]{0}', space=vmem, size = 0x20000, scoped, tag = 'input window, operand 5, single buffered']
    #allocation8 [shape = 's32[1]{0}', space=sflag, size = 0x4, scoped, tag = 'scoped memory for mlp_forward.1']
    %12 = vsyncpa [#allocation3], 0
    %13 = vsyncpa [#allocation5], 0
    %14 = vsyncpa [#allocation8], 0
    // Predicated region
    $region2: #{mlp_forward.1} parent=1 // pred_check
      _
    $region3: #{mlp_forward.1} parent=1 // pred_check_branch
      %16 = sbr.rel (0) target = $region5
    $region4: #{mlp_forward.1} parent=1 // pred_region
      %s18 = ssub.s32 128, 128
      %19 = vsyncadd [#allocation3], %s18
      %s21 = sshll.u32 [#allocation2], 4
      %s22 = int_to_ptr.vmem [resolvable:$true] %s21
      %24 = dma.hbm_to_vmem [thread:$0]  %s0, 128, %s22, [#allocation3]
    $region5: #{mlp_forward.1} parent=1 // pred_fallthru
      _
    // Predicated region
    $region6: #{mlp_forward.1} parent=1 // pred_check
      _
    $region7: #{mlp_forward.1} parent=1 // pred_check_branch
      %26 = sbr.rel (0) target = $region9
    $region8: #{mlp_forward.1} parent=1 // pred_region
      %s28 = ssub.s32 1024, 1024
      %29 = vsyncadd [#allocation5], %s28
      %s30 = sshll.u32 [#allocation4], 4
      %s31 = int_to_ptr.vmem [resolvable:$true] %s30
      %36 = dma.hbm_to_vmem [thread:$0]  %s1, 1024, %s31, [#allocation5], 128, 128, 8
    $region9: #{mlp_forward.1} parent=1 // pred_fallthru
      _
    // Predicated region
    $region10: #{mlp_forward.1} parent=1 // pred_check
      _
    $region11: #{mlp_forward.1} parent=1 // pred_check_branch
      %38 = sbr.rel (0) target = $region13
    $region12: #{mlp_forward.1} parent=1 // pred_region
      _
    $region13: #{mlp_forward.1} parent=1 // pred_fallthru
      _
    // Predicated region
    $region14: #{mlp_forward.1} parent=1 // pred_check
      _
    $region15: #{mlp_forward.1} parent=1 // pred_check_branch
      %40 = sbr.rel (0) target = $region17
    $region16: #{mlp_forward.1} parent=1 // pred_region
      %s42 = ssub.s32 8192, 8192
      %43 = vsyncadd [#allocation5], %s42
      %s44 = sshll.u32 [#allocation6], 4
      %s45 = int_to_ptr.vmem [resolvable:$true] %s44
      %50 = dma.hbm_to_vmem [thread:$0]  %s3, 8192, %s45, [#allocation5], 256, 256, 16
    $region17: #{mlp_forward.1} parent=1 // pred_fallthru
      _
    // Predicated region
    $region18: #{mlp_forward.1} parent=1 // pred_check
      _
    $region19: #{mlp_forward.1} parent=1 // pred_check_branch
      %52 = sbr.rel (0) target = $region21
    $region20: #{mlp_forward.1} parent=1 // pred_region
      _
    $region21: #{mlp_forward.1} parent=1 // pred_fallthru
      _
    // Predicated region
    $region22: #{mlp_forward.1} parent=1 // pred_check
      _
    $region23: #{mlp_forward.1} parent=1 // pred_check_branch
      %54 = sbr.rel (0) target = $region25
    $region24: #{mlp_forward.1} parent=1 // pred_region
      %s56 = ssub.s32 4096, 4096
      %57 = vsyncadd [#allocation8], %s56
      %s58 = sshll.u32 [#allocation7], 4
      %s59 = int_to_ptr.vmem [resolvable:$true] %s58
      %64 = dma.hbm_to_vmem [thread:$0]  %s5, 4096, %s59, [#allocation8], 64, 64, 4
    $region25: #{mlp_forward.1} parent=1 // pred_fallthru
      _
    // Predicated region
    $region26: #{mlp_forward.1} parent=1 // pred_check
      _
    $region27: #{mlp_forward.1} parent=1 // pred_check_branch
      %66 = sbr.rel (0) target = $region29
    $region28: #{mlp_forward.1} parent=1 // pred_region
      _
    $region29: #{mlp_forward.1} parent=1 // pred_fallthru
      _
    // Predicated region
    $region30: #{mlp_forward.1} parent=1 // pred_check
      _
    $region31: #{mlp_forward.1} parent=1 // pred_check_branch
      %68 = sbr.rel (0) target = $region33
    $region32: #{mlp_forward.1} parent=1 // pred_region
      %69 = dma.done [#allocation3], 128
    $region33: #{mlp_forward.1} parent=1 // pred_fallthru
      _
    // Predicated region
    $region34: #{mlp_forward.1} parent=1 // pred_check
      _
    $region35: #{mlp_forward.1} parent=1 // pred_check_branch
      %71 = sbr.rel (0) target = $region37
    $region36: #{mlp_forward.1} parent=1 // pred_region
      %72 = dma.done [#allocation5], 1024
    $region37: #{mlp_forward.1} parent=1 // pred_fallthru
      _
    // Predicated region
    $region38: #{mlp_forward.1} parent=1 // pred_check
      _
    $region39: #{mlp_forward.1} parent=1 // pred_check_branch
      %74 = sbr.rel (0) target = $region41
    $region40: #{mlp_forward.1} parent=1 // pred_region
      %75 = dma.done [#allocation5], 8192
    $region41: #{mlp_forward.1} parent=1 // pred_fallthru
      _
    // Predicated region
    $region42: #{mlp_forward.1} parent=1 // pred_check
      _
    $region43: #{mlp_forward.1} parent=1 // pred_check_branch
      %77 = sbr.rel (0) target = $region45
    $region44: #{mlp_forward.1} parent=1 // pred_region
      %78 = dma.done [#allocation8], 4096
    $region45: #{mlp_forward.1} parent=1 // pred_fallthru
      _
    %v80 = vld [vmem:[#allocation2] sm:$0xff]
    %v81 = vpack.c.bf16 %v80, %v80
    %v82 = vld [vmem:[#allocation4] sm:$0xff]
    %v83 = vld [vmem:[#allocation4 + $0x8] sm:$0xff]
    %v84 = vld [vmem:[#allocation4 + $0x10] sm:$0xff]
    %v85 = vld [vmem:[#allocation4 + $0x18] sm:$0xff]
    %v86 = vld [vmem:[#allocation4 + $0x20] sm:$0xff]
    %v87 = vld [vmem:[#allocation4 + $0x28] sm:$0xff]
    %v88 = vld [vmem:[#allocation4 + $0x30] sm:$0xff]
    %v89 = vld [vmem:[#allocation4 + $0x38] sm:$0xff]
    %v90 = vld [vmem:[%s2] sm:$0x3]
    %v92 = vlaneseq
    %v93 = vshrl.u32 %v92, 7
    %v94 = vsub.s32 0, %v93
    %v95 = vrot.slane %v90, %v94
    %v96 = vlaneseq
    %v97 = vshrl.u32 %v96, 7
    %v98 = vsub.s32 1, %v97
    %v99 = vrot.slane %v90, %v98
    %v110 = vunpack.c.l.b16 %v82
    %v111 = vunpack.c.h.b16 %v82
    %v112 = vunpack.c.l.b16 %v83
    %v113 = vunpack.c.h.b16 %v83
    %v114 = vunpack.c.l.b16 %v84
    %v115 = vunpack.c.h.b16 %v84
    %v116 = vunpack.c.l.b16 %v85
    %v117 = vunpack.c.h.b16 %v85
    %v118 = vunpack.c.l.b16 %v86
    %v119 = vunpack.c.h.b16 %v86
    %v120 = vunpack.c.l.b16 %v87
    %v121 = vunpack.c.h.b16 %v87
    %v122 = vunpack.c.l.b16 %v88
    %v123 = vunpack.c.h.b16 %v88
    %v124 = vunpack.c.l.b16 %v89
    %v125 = vunpack.c.h.b16 %v89
    %v126 = vpack.c.b16 %v112, %v110
    %v127 = vpack.c.b16 %v113, %v111
    %v128 = vpack.c.b16 %v116, %v114
    %v129 = vpack.c.b16 %v117, %v115
    %v130 = vpack.c.b16 %v120, %v118
    %v131 = vpack.c.b16 %v121, %v119
    %v132 = vpack.c.b16 %v124, %v122
    %v133 = vpack.c.b16 %v125, %v123
    %vm142 = vcmask 523264
    %v144 = vsel %vm142, %v81, 0
    %146 = vmatprep.subr.bf16.mxu0 %v127
    %147 = vmatpush1.bf16.msra.mxu0 %v126
    %148 = vmatprep.subr.bf16.mxu0 %v129
    %149 = vmatpush1.bf16.msra.mxu0 %v128
    %150 = vmatprep.subr.bf16.mxu0 %v131
    %151 = vmatpush1.bf16.msra.mxu0 %v130
    %152 = vmatprep.subr.bf16.mxu0 %v133
    %153 = vmatpush1.bf16.msra.mxu0 %v132
    %154 = vmatprep.subr.bf16.mxu0 0
    %155 = vmatpush1.bf16.msra.mxu0 0
    %156 = vmatprep.subr.bf16.mxu0 0
    %157 = vmatpush1.bf16.msra.mxu0 0
    %158 = vmatprep.subr.bf16.mxu0 0
    %159 = vmatpush1.bf16.msra.mxu0 0
    %160 = vmatprep.subr.bf16.mxu0 0
    %161 = vmatpush1.bf16.msra.mxu0 0
    %162 = vmatprep.subr.bf16.mxu0 0
    %163 = vmatpush1.bf16.msra.mxu0 0
    %164 = vmatprep.subr.bf16.mxu0 0
    %165 = vmatpush1.bf16.msra.mxu0 0
    %166 = vmatprep.subr.bf16.mxu0 0
    %167 = vmatpush1.bf16.msra.mxu0 0
    %168 = vmatprep.subr.bf16.mxu0 0
    %169 = vmatpush1.bf16.msra.mxu0 0
    %170 = vmatprep.subr.bf16.mxu0 0
    %171 = vmatpush1.bf16.msra.mxu0 0
    %172 = vmatprep.subr.bf16.mxu0 0
    %173 = vmatpush1.bf16.msra.mxu0 0
    %174 = vmatprep.subr.bf16.mxu0 0
    %175 = vmatpush1.bf16.msra.mxu0 0
    %176 = vmatprep.subr.bf16.mxu0 0
    %177 = vmatpush1.bf16.msra.mxu0 0
    %178 = vmatprep.mubr.bf16.mxu0 0
    %179 = vmatmul.mubr.bf16.gmra.mrb[0].mxu0 %v144
    %v180 = vpop.f32.mrb[0].mxu0
    %v181 = vadd.f32 %v95, %v180
    %v182 = vpop.f32.mrb[0].mxu0
    %v183 = vadd.f32 %v99, %v182
    %v184 = vpop.f32.mrb[0].mxu0
    %v185 = vpop.f32.mrb[0].mxu0
    %186 = vdwg.mxu0
    %v187 = vmax.f32 %v181, 0.0
    %v188 = vmax.f32 %v183, 0.0
    %v189 = vpack.c.bf16 %v187, %v187
    %v190 = vpack.c.bf16 %v188, %v188
    %v191 = vld [vmem:[#allocation6] sm:$0xff]
    %v192 = vld [vmem:[#allocation6 + $0x8] sm:$0xff]
    %v193 = vld [vmem:[#allocation6 + $0x10] sm:$0xff]
    %v194 = vld [vmem:[#allocation6 + $0x18] sm:$0xff]
    %v195 = vld [vmem:[#allocation6 + $0x20] sm:$0xff]
    %v196 = vld [vmem:[#allocation6 + $0x28] sm:$0xff]
    %v197 = vld [vmem:[#allocation6 + $0x30] sm:$0xff]
    %v198 = vld [vmem:[#allocation6 + $0x38] sm:$0xff]
    %v199 = vld [vmem:[#allocation6 + $0x40] sm:$0xff]
    %v200 = vld [vmem:[#allocation6 + $0x48] sm:$0xff]
    %v201 = vld [vmem:[#allocation6 + $0x50] sm:$0xff]
    %v202 = vld [vmem:[#allocation6 + $0x58] sm:$0xff]
    %v203 = vld [vmem:[#allocation6 + $0x60] sm:$0xff]
    %v204 = vld [vmem:[#allocation6 + $0x68] sm:$0xff]
    %v205 = vld [vmem:[#allocation6 + $0x70] sm:$0xff]
    %v206 = vld [vmem:[#allocation6 + $0x78] sm:$0xff]
    %v207 = vld [vmem:[#allocation6 + $0x80] sm:$0xff]
    %v208 = vld [vmem:[#allocation6 + $0x88] sm:$0xff]
    %v209 = vld [vmem:[#allocation6 + $0x90] sm:$0xff]
    %v210 = vld [vmem:[#allocation6 + $0x98] sm:$0xff]
    %v211 = vld [vmem:[#allocation6 + $0xa0] sm:$0xff]
    %v212 = vld [vmem:[#allocation6 + $0xa8] sm:$0xff]
    %v213 = vld [vmem:[#allocation6 + $0xb0] sm:$0xff]
    %v214 = vld [vmem:[#allocation6 + $0xb8] sm:$0xff]
    %v215 = vld [vmem:[#allocation6 + $0xc0] sm:$0xff]
    %v216 = vld [vmem:[#allocation6 + $0xc8] sm:$0xff]
    %v217 = vld [vmem:[#allocation6 + $0xd0] sm:$0xff]
    %v218 = vld [vmem:[#allocation6 + $0xd8] sm:$0xff]
    %v219 = vld [vmem:[#allocation6 + $0xe0] sm:$0xff]
    %v220 = vld [vmem:[#allocation6 + $0xe8] sm:$0xff]
    %v221 = vld [vmem:[#allocation6 + $0xf0] sm:$0xff]
    %v222 = vld [vmem:[#allocation6 + $0xf8] sm:$0xff]
    %v223 = vld [vmem:[#allocation6 + $0x100] sm:$0xff]
    %v224 = vld [vmem:[#allocation6 + $0x108] sm:$0xff]
    %v225 = vld [vmem:[#allocation6 + $0x110] sm:$0xff]
    %v226 = vld [vmem:[#allocation6 + $0x118] sm:$0xff]
    %v227 = vld [vmem:[#allocation6 + $0x120] sm:$0xff]
    %v228 = vld [vmem:[#allocation6 + $0x128] sm:$0xff]
    %v229 = vld [vmem:[#allocation6 + $0x130] sm:$0xff]
    %v230 = vld [vmem:[#allocation6 + $0x138] sm:$0xff]
    %v231 = vld [vmem:[#allocation6 + $0x140] sm:$0xff]
    %v232 = vld [vmem:[#allocation6 + $0x148] sm:$0xff]
    %v233 = vld [vmem:[#allocation6 + $0x150] sm:$0xff]
    %v234 = vld [vmem:[#allocation6 + $0x158] sm:$0xff]
    %v235 = vld [vmem:[#allocation6 + $0x160] sm:$0xff]
    %v236 = vld [vmem:[#allocation6 + $0x168] sm:$0xff]
    %v237 = vld [vmem:[#allocation6 + $0x170] sm:$0xff]
    %v238 = vld [vmem:[#allocation6 + $0x178] sm:$0xff]
    %v239 = vld [vmem:[#allocation6 + $0x180] sm:$0xff]
    %v240 = vld [vmem:[#allocation6 + $0x188] sm:$0xff]
    %v241 = vld [vmem:[#allocation6 + $0x190] sm:$0xff]
    %v242 = vld [vmem:[#allocation6 + $0x198] sm:$0xff]
    %v243 = vld [vmem:[#allocation6 + $0x1a0] sm:$0xff]
    %v244 = vld [vmem:[#allocation6 + $0x1a8] sm:$0xff]
    %v245 = vld [vmem:[#allocation6 + $0x1b0] sm:$0xff]
    %v246 = vld [vmem:[#allocation6 + $0x1b8] sm:$0xff]
    %v247 = vld [vmem:[#allocation6 + $0x1c0] sm:$0xff]
    %v248 = vld [vmem:[#allocation6 + $0x1c8] sm:$0xff]
    %v249 = vld [vmem:[#allocation6 + $0x1d0] sm:$0xff]
    %v250 = vld [vmem:[#allocation6 + $0x1d8] sm:$0xff]
    %v251 = vld [vmem:[#allocation6 + $0x1e0] sm:$0xff]
    %v252 = vld [vmem:[#allocation6 + $0x1e8] sm:$0xff]
    %v253 = vld [vmem:[#allocation6 + $0x1f0] sm:$0xff]
    %v254 = vld [vmem:[#allocation6 + $0x1f8] sm:$0xff]
    %v255 = vld [vmem:[%s4] sm:$0xf]
    %v257 = vlaneseq
    %v258 = vshrl.u32 %v257, 7
    %v259 = vsub.s32 0, %v258
    %v260 = vrot.slane %v255, %v259
    %v261 = vlaneseq
    %v262 = vshrl.u32 %v261, 7
    %v263 = vsub.s32 1, %v262
    %v264 = vrot.slane %v255, %v263
    %v265 = vlaneseq
    %v266 = vshrl.u32 %v265, 7
    %v267 = vsub.s32 2, %v266
    %v268 = vrot.slane %v255, %v267
    %v269 = vlaneseq
    %v270 = vshrl.u32 %v269, 7
    %v271 = vsub.s32 3, %v270
    %v272 = vrot.slane %v255, %v271
    %v341 = vunpack.c.l.b16 %v191
    %v342 = vunpack.c.h.b16 %v191
    %v343 = vunpack.c.l.b16 %v192
    %v344 = vunpack.c.h.b16 %v192
    %v345 = vunpack.c.l.b16 %v193
    %v346 = vunpack.c.h.b16 %v193
    %v347 = vunpack.c.l.b16 %v194
    %v348 = vunpack.c.h.b16 %v194
    %v349 = vunpack.c.l.b16 %v195
    %v350 = vunpack.c.h.b16 %v195
    %v351 = vunpack.c.l.b16 %v196
    %v352 = vunpack.c.h.b16 %v196
    %v353 = vunpack.c.l.b16 %v197
    %v354 = vunpack.c.h.b16 %v197
    %v355 = vunpack.c.l.b16 %v198
    %v356 = vunpack.c.h.b16 %v198
    %v357 = vunpack.c.l.b16 %v199
    %v358 = vunpack.c.h.b16 %v199
    %v359 = vunpack.c.l.b16 %v200
    %v360 = vunpack.c.h.b16 %v200
    %v361 = vunpack.c.l.b16 %v201
    %v362 = vunpack.c.h.b16 %v201
    %v363 = vunpack.c.l.b16 %v202
    %v364 = vunpack.c.h.b16 %v202
    %v365 = vunpack.c.l.b16 %v203
    %v366 = vunpack.c.h.b16 %v203
    %v367 = vunpack.c.l.b16 %v204
    %v368 = vunpack.c.h.b16 %v204
    %v369 = vunpack.c.l.b16 %v205
    %v370 = vunpack.c.h.b16 %v205
    %v371 = vunpack.c.l.b16 %v206
    %v372 = vunpack.c.h.b16 %v206
    %v373 = vunpack.c.l.b16 %v207
    %v374 = vunpack.c.h.b16 %v207
    %v375 = vunpack.c.l.b16 %v208
    %v376 = vunpack.c.h.b16 %v208
    %v377 = vunpack.c.l.b16 %v209
    %v378 = vunpack.c.h.b16 %v209
    %v379 = vunpack.c.l.b16 %v210
    %v380 = vunpack.c.h.b16 %v210
    %v381 = vunpack.c.l.b16 %v211
    %v382 = vunpack.c.h.b16 %v211
    %v383 = vunpack.c.l.b16 %v212
    %v384 = vunpack.c.h.b16 %v212
    %v385 = vunpack.c.l.b16 %v213
    %v386 = vunpack.c.h.b16 %v213
    %v387 = vunpack.c.l.b16 %v214
    %v388 = vunpack.c.h.b16 %v214
    %v389 = vunpack.c.l.b16 %v215
    %v390 = vunpack.c.h.b16 %v215
    %v391 = vunpack.c.l.b16 %v216
    %v392 = vunpack.c.h.b16 %v216
    %v393 = vunpack.c.l.b16 %v217
    %v394 = vunpack.c.h.b16 %v217
    %v395 = vunpack.c.l.b16 %v218
    %v396 = vunpack.c.h.b16 %v218
    %v397 = vunpack.c.l.b16 %v219
    %v398 = vunpack.c.h.b16 %v219
    %v399 = vunpack.c.l.b16 %v220
    %v400 = vunpack.c.h.b16 %v220
    %v401 = vunpack.c.l.b16 %v221
    %v402 = vunpack.c.h.b16 %v221
    %v403 = vunpack.c.l.b16 %v222
    %v404 = vunpack.c.h.b16 %v222
    %v405 = vunpack.c.l.b16 %v223
    %v406 = vunpack.c.h.b16 %v223
    %v407 = vunpack.c.l.b16 %v224
    %v408 = vunpack.c.h.b16 %v224
    %v409 = vunpack.c.l.b16 %v225
    %v410 = vunpack.c.h.b16 %v225
    %v411 = vunpack.c.l.b16 %v226
    %v412 = vunpack.c.h.b16 %v226
    %v413 = vunpack.c.l.b16 %v227
    %v414 = vunpack.c.h.b16 %v227
    %v415 = vunpack.c.l.b16 %v228
    %v416 = vunpack.c.h.b16 %v228
    %v417 = vunpack.c.l.b16 %v229
    %v418 = vunpack.c.h.b16 %v229
    %v419 = vunpack.c.l.b16 %v230
    %v420 = vunpack.c.h.b16 %v230
    %v421 = vunpack.c.l.b16 %v231
    %v422 = vunpack.c.h.b16 %v231
    %v423 = vunpack.c.l.b16 %v232
    %v424 = vunpack.c.h.b16 %v232
    %v425 = vunpack.c.l.b16 %v233
    %v426 = vunpack.c.h.b16 %v233
    %v427 = vunpack.c.l.b16 %v234
    %v428 = vunpack.c.h.b16 %v234
    %v429 = vunpack.c.l.b16 %v235
    %v430 = vunpack.c.h.b16 %v235
    %v431 = vunpack.c.l.b16 %v236
    %v432 = vunpack.c.h.b16 %v236
    %v433 = vunpack.c.l.b16 %v237
    %v434 = vunpack.c.h.b16 %v237
    %v435 = vunpack.c.l.b16 %v238
    %v436 = vunpack.c.h.b16 %v238
    %v437 = vunpack.c.l.b16 %v239
    %v438 = vunpack.c.h.b16 %v239
    %v439 = vunpack.c.l.b16 %v240
    %v440 = vunpack.c.h.b16 %v240
    %v441 = vunpack.c.l.b16 %v241
    %v442 = vunpack.c.h.b16 %v241
    %v443 = vunpack.c.l.b16 %v242
    %v444 = vunpack.c.h.b16 %v242
    %v445 = vunpack.c.l.b16 %v243
    %v446 = vunpack.c.h.b16 %v243
    %v447 = vunpack.c.l.b16 %v244
    %v448 = vunpack.c.h.b16 %v244
    %v449 = vunpack.c.l.b16 %v245
    %v450 = vunpack.c.h.b16 %v245
    %v451 = vunpack.c.l.b16 %v246
    %v452 = vunpack.c.h.b16 %v246
    %v453 = vunpack.c.l.b16 %v247
    %v454 = vunpack.c.h.b16 %v247
    %v455 = vunpack.c.l.b16 %v248
    %v456 = vunpack.c.h.b16 %v248
    %v457 = vunpack.c.l.b16 %v249
    %v458 = vunpack.c.h.b16 %v249
    %v459 = vunpack.c.l.b16 %v250
    %v460 = vunpack.c.h.b16 %v250
    %v461 = vunpack.c.l.b16 %v251
    %v462 = vunpack.c.h.b16 %v251
    %v463 = vunpack.c.l.b16 %v252
    %v464 = vunpack.c.h.b16 %v252
    %v465 = vunpack.c.l.b16 %v253
    %v466 = vunpack.c.h.b16 %v253
    %v467 = vunpack.c.l.b16 %v254
    %v468 = vunpack.c.h.b16 %v254
    %v469 = vpack.c.b16 %v345, %v341
    %v470 = vpack.c.b16 %v346, %v342
    %v471 = vpack.c.b16 %v347, %v343
    %v472 = vpack.c.b16 %v348, %v344
    %v473 = vpack.c.b16 %v353, %v349
    %v474 = vpack.c.b16 %v354, %v350
    %v475 = vpack.c.b16 %v355, %v351
    %v476 = vpack.c.b16 %v356, %v352
    %v477 = vpack.c.b16 %v361, %v357
    %v478 = vpack.c.b16 %v362, %v358
    %v479 = vpack.c.b16 %v363, %v359
    %v480 = vpack.c.b16 %v364, %v360
    %v481 = vpack.c.b16 %v369, %v365
    %v482 = vpack.c.b16 %v370, %v366
    %v483 = vpack.c.b16 %v371, %v367
    %v484 = vpack.c.b16 %v372, %v368
    %v485 = vpack.c.b16 %v377, %v373
    %v486 = vpack.c.b16 %v378, %v374
    %v487 = vpack.c.b16 %v379, %v375
    %v488 = vpack.c.b16 %v380, %v376
    %v489 = vpack.c.b16 %v385, %v381
    %v490 = vpack.c.b16 %v386, %v382
    %v491 = vpack.c.b16 %v387, %v383
    %v492 = vpack.c.b16 %v388, %v384
    %v493 = vpack.c.b16 %v393, %v389
    %v494 = vpack.c.b16 %v394, %v390
    %v495 = vpack.c.b16 %v395, %v391
    %v496 = vpack.c.b16 %v396, %v392
    %v497 = vpack.c.b16 %v401, %v397
    %v498 = vpack.c.b16 %v402, %v398
    %v499 = vpack.c.b16 %v403, %v399
    %v500 = vpack.c.b16 %v404, %v400
    %v501 = vpack.c.b16 %v409, %v405
    %v502 = vpack.c.b16 %v410, %v406
    %v503 = vpack.c.b16 %v411, %v407
    %v504 = vpack.c.b16 %v412, %v408
    %v505 = vpack.c.b16 %v417, %v413
    %v506 = vpack.c.b16 %v418, %v414
    %v507 = vpack.c.b16 %v419, %v415
    %v508 = vpack.c.b16 %v420, %v416
    %v509 = vpack.c.b16 %v425, %v421
    %v510 = vpack.c.b16 %v426, %v422
    %v511 = vpack.c.b16 %v427, %v423
    %v512 = vpack.c.b16 %v428, %v424
    %v513 = vpack.c.b16 %v433, %v429
    %v514 = vpack.c.b16 %v434, %v430
    %v515 = vpack.c.b16 %v435, %v431
    %v516 = vpack.c.b16 %v436, %v432
    %v517 = vpack.c.b16 %v441, %v437
    %v518 = vpack.c.b16 %v442, %v438
    %v519 = vpack.c.b16 %v443, %v439
    %v520 = vpack.c.b16 %v444, %v440
    %v521 = vpack.c.b16 %v449, %v445
    %v522 = vpack.c.b16 %v450, %v446
    %v523 = vpack.c.b16 %v451, %v447
    %v524 = vpack.c.b16 %v452, %v448
    %v525 = vpack.c.b16 %v457, %v453
    %v526 = vpack.c.b16 %v458, %v454
    %v527 = vpack.c.b16 %v459, %v455
    %v528 = vpack.c.b16 %v460, %v456
    %v529 = vpack.c.b16 %v465, %v461
    %v530 = vpack.c.b16 %v466, %v462
    %v531 = vpack.c.b16 %v467, %v463
    %v532 = vpack.c.b16 %v468, %v464
    %597 = vmatprep.subr.bf16.mxu0 %v470
    %598 = vmatpush1.bf16.msra.mxu0 %v469
    %599 = vmatprep.subr.bf16.mxu0 %v474
    %600 = vmatpush1.bf16.msra.mxu0 %v473
    %601 = vmatprep.subr.bf16.mxu0 %v478
    %602 = vmatpush1.bf16.msra.mxu0 %v477
    %603 = vmatprep.subr.bf16.mxu0 %v482
    %604 = vmatpush1.bf16.msra.mxu0 %v481
    %605 = vmatprep.subr.bf16.mxu0 %v486
    %606 = vmatpush1.bf16.msra.mxu0 %v485
    %607 = vmatprep.subr.bf16.mxu0 %v490
    %608 = vmatpush1.bf16.msra.mxu0 %v489
    %609 = vmatprep.subr.bf16.mxu0 %v494
    %610 = vmatpush1.bf16.msra.mxu0 %v493
    %611 = vmatprep.subr.bf16.mxu0 %v498
    %612 = vmatpush1.bf16.msra.mxu0 %v497
    %613 = vmatprep.subr.bf16.mxu0 %v502
    %614 = vmatpush1.bf16.msra.mxu0 %v501
    %615 = vmatprep.subr.bf16.mxu0 %v506
    %616 = vmatpush1.bf16.msra.mxu0 %v505
    %617 = vmatprep.subr.bf16.mxu0 %v510
    %618 = vmatpush1.bf16.msra.mxu0 %v509
    %619 = vmatprep.subr.bf16.mxu0 %v514
    %620 = vmatpush1.bf16.msra.mxu0 %v513
    %621 = vmatprep.subr.bf16.mxu0 %v518
    %622 = vmatpush1.bf16.msra.mxu0 %v517
    %623 = vmatprep.subr.bf16.mxu0 %v522
    %624 = vmatpush1.bf16.msra.mxu0 %v521
    %625 = vmatprep.subr.bf16.mxu0 %v526
    %626 = vmatpush1.bf16.msra.mxu0 %v525
    %627 = vmatprep.subr.bf16.mxu0 %v530
    %628 = vmatpush1.bf16.msra.mxu0 %v529
    %629 = vmatprep.mubr.bf16.mxu0 %v190
    %630 = vmatmul.mubr.bf16.gmra.mrb[0].mxu0 %v189
    %v631 = vpop.f32.mrb[0].mxu0
    %v632 = vadd.f32 %v260, %v631
    %v633 = vpop.f32.mrb[0].mxu0
    %v634 = vadd.f32 %v264, %v633
    %v635 = vpop.f32.mrb[0].mxu0
    %v636 = vpop.f32.mrb[0].mxu0
    %637 = vdwg.mxu0
    %638 = vmatprep.subr.bf16.mxu0 %v472
    %639 = vmatpush1.bf16.msra.mxu0 %v471
    %640 = vmatprep.subr.bf16.mxu0 %v476
    %641 = vmatpush1.bf16.msra.mxu0 %v475
    %642 = vmatprep.subr.bf16.mxu0 %v480
    %643 = vmatpush1.bf16.msra.mxu0 %v479
    %644 = vmatprep.subr.bf16.mxu0 %v484
    %645 = vmatpush1.bf16.msra.mxu0 %v483
    %646 = vmatprep.subr.bf16.mxu0 %v488
    %647 = vmatpush1.bf16.msra.mxu0 %v487
    %648 = vmatprep.subr.bf16.mxu0 %v492
    %649 = vmatpush1.bf16.msra.mxu0 %v491
    %650 = vmatprep.subr.bf16.mxu0 %v496
    %651 = vmatpush1.bf16.msra.mxu0 %v495
    %652 = vmatprep.subr.bf16.mxu0 %v500
    %653 = vmatpush1.bf16.msra.mxu0 %v499
    %654 = vmatprep.subr.bf16.mxu0 %v504
    %655 = vmatpush1.bf16.msra.mxu0 %v503
    %656 = vmatprep.subr.bf16.mxu0 %v508
    %657 = vmatpush1.bf16.msra.mxu0 %v507
    %658 = vmatprep.subr.bf16.mxu0 %v512
    %659 = vmatpush1.bf16.msra.mxu0 %v511
    %660 = vmatprep.subr.bf16.mxu0 %v516
    %661 = vmatpush1.bf16.msra.mxu0 %v515
    %662 = vmatprep.subr.bf16.mxu0 %v520
    %663 = vmatpush1.bf16.msra.mxu0 %v519
    %664 = vmatprep.subr.bf16.mxu0 %v524
    %665 = vmatpush1.bf16.msra.mxu0 %v523
    %666 = vmatprep.subr.bf16.mxu0 %v528
    %667 = vmatpush1.bf16.msra.mxu0 %v527
    %668 = vmatprep.subr.bf16.mxu0 %v532
    %669 = vmatpush1.bf16.msra.mxu0 %v531
    %670 = vmatprep.mubr.bf16.mxu0 %v190
    %671 = vmatmul.mubr.bf16.gmra.mrb[0].mxu0 %v189
    %v672 = vpop.f32.mrb[0].mxu0
    %v673 = vadd.f32 %v268, %v672
    %v674 = vpop.f32.mrb[0].mxu0
    %v675 = vadd.f32 %v272, %v674
    %v676 = vpop.f32.mrb[0].mxu0
    %v677 = vpop.f32.mrb[0].mxu0
    %678 = vdwg.mxu0
    %v679 = vmax.f32 %v632, 0.0
    %v680 = vmax.f32 %v634, 0.0
    %v681 = vmax.f32 %v673, 0.0
    %v682 = vmax.f32 %v675, 0.0
    %v683 = vpack.c.bf16 %v679, %v679
    %v684 = vpack.c.bf16 %v680, %v680
    %v685 = vpack.c.bf16 %v681, %v681
    %v686 = vpack.c.bf16 %v682, %v682
    %v687 = vld [vmem:[#allocation7] sm:$0xf]
    %v688 = vld [vmem:[#allocation7 + $0x4] sm:$0xf]
    %v689 = vld [vmem:[#allocation7 + $0x8] sm:$0xf]
    %v690 = vld [vmem:[#allocation7 + $0xc] sm:$0xf]
    %v691 = vld [vmem:[#allocation7 + $0x10] sm:$0xf]
    %v692 = vld [vmem:[#allocation7 + $0x14] sm:$0xf]
    %v693 = vld [vmem:[#allocation7 + $0x18] sm:$0xf]
    %v694 = vld [vmem:[#allocation7 + $0x1c] sm:$0xf]
    %v695 = vld [vmem:[#allocation7 + $0x20] sm:$0xf]
    %v696 = vld [vmem:[#allocation7 + $0x24] sm:$0xf]
    %v697 = vld [vmem:[#allocation7 + $0x28] sm:$0xf]
    %v698 = vld [vmem:[#allocation7 + $0x2c] sm:$0xf]
    %v699 = vld [vmem:[#allocation7 + $0x30] sm:$0xf]
    %v700 = vld [vmem:[#allocation7 + $0x34] sm:$0xf]
    %v701 = vld [vmem:[#allocation7 + $0x38] sm:$0xf]
    %v702 = vld [vmem:[#allocation7 + $0x3c] sm:$0xf]
    %v703 = vld [vmem:[#allocation7 + $0x40] sm:$0xf]
    %v704 = vld [vmem:[#allocation7 + $0x44] sm:$0xf]
    %v705 = vld [vmem:[#allocation7 + $0x48] sm:$0xf]
    %v706 = vld [vmem:[#allocation7 + $0x4c] sm:$0xf]
    %v707 = vld [vmem:[#allocation7 + $0x50] sm:$0xf]
    %v708 = vld [vmem:[#allocation7 + $0x54] sm:$0xf]
    %v709 = vld [vmem:[#allocation7 + $0x58] sm:$0xf]
    %v710 = vld [vmem:[#allocation7 + $0x5c] sm:$0xf]
    %v711 = vld [vmem:[#allocation7 + $0x60] sm:$0xf]
    %v712 = vld [vmem:[#allocation7 + $0x64] sm:$0xf]
    %v713 = vld [vmem:[#allocation7 + $0x68] sm:$0xf]
    %v714 = vld [vmem:[#allocation7 + $0x6c] sm:$0xf]
    %v715 = vld [vmem:[#allocation7 + $0x70] sm:$0xf]
    %v716 = vld [vmem:[#allocation7 + $0x74] sm:$0xf]
    %v717 = vld [vmem:[#allocation7 + $0x78] sm:$0xf]
    %v718 = vld [vmem:[#allocation7 + $0x7c] sm:$0xf]
    %v719 = vld [vmem:[#allocation7 + $0x80] sm:$0xf]
    %v720 = vld [vmem:[#allocation7 + $0x84] sm:$0xf]
    %v721 = vld [vmem:[#allocation7 + $0x88] sm:$0xf]
    %v722 = vld [vmem:[#allocation7 + $0x8c] sm:$0xf]
    %v723 = vld [vmem:[#allocation7 + $0x90] sm:$0xf]
    %v724 = vld [vmem:[#allocation7 + $0x94] sm:$0xf]
    %v725 = vld [vmem:[#allocation7 + $0x98] sm:$0xf]
    %v726 = vld [vmem:[#allocation7 + $0x9c] sm:$0xf]
    %v727 = vld [vmem:[#allocation7 + $0xa0] sm:$0xf]
    %v728 = vld [vmem:[#allocation7 + $0xa4] sm:$0xf]
    %v729 = vld [vmem:[#allocation7 + $0xa8] sm:$0xf]
    %v730 = vld [vmem:[#allocation7 + $0xac] sm:$0xf]
    %v731 = vld [vmem:[#allocation7 + $0xb0] sm:$0xf]
    %v732 = vld [vmem:[#allocation7 + $0xb4] sm:$0xf]
    %v733 = vld [vmem:[#allocation7 + $0xb8] sm:$0xf]
    %v734 = vld [vmem:[#allocation7 + $0xbc] sm:$0xf]
    %v735 = vld [vmem:[#allocation7 + $0xc0] sm:$0xf]
    %v736 = vld [vmem:[#allocation7 + $0xc4] sm:$0xf]
    %v737 = vld [vmem:[#allocation7 + $0xc8] sm:$0xf]
    %v738 = vld [vmem:[#allocation7 + $0xcc] sm:$0xf]
    %v739 = vld [vmem:[#allocation7 + $0xd0] sm:$0xf]
    %v740 = vld [vmem:[#allocation7 + $0xd4] sm:$0xf]
    %v741 = vld [vmem:[#allocation7 + $0xd8] sm:$0xf]
    %v742 = vld [vmem:[#allocation7 + $0xdc] sm:$0xf]
    %v743 = vld [vmem:[#allocation7 + $0xe0] sm:$0xf]
    %v744 = vld [vmem:[#allocation7 + $0xe4] sm:$0xf]
    %v745 = vld [vmem:[#allocation7 + $0xe8] sm:$0xf]
    %v746 = vld [vmem:[#allocation7 + $0xec] sm:$0xf]
    %v747 = vld [vmem:[#allocation7 + $0xf0] sm:$0xf]
    %v748 = vld [vmem:[#allocation7 + $0xf4] sm:$0xf]
    %v749 = vld [vmem:[#allocation7 + $0xf8] sm:$0xf]
    %v750 = vld [vmem:[#allocation7 + $0xfc] sm:$0xf]
    %v751 = vld [vmem:[%s6] sm:$0x1]
    %v753 = vlaneseq
    %v754 = vshrl.u32 %v753, 7
    %v755 = vsub.s32 0, %v754
    %v756 = vrot.slane %v751, %v755
    %v822 = vunpack.c.l.b16 %v687
    %v823 = vunpack.c.l.b16 %v688
    %v824 = vunpack.c.l.b16 %v689
    %v825 = vunpack.c.l.b16 %v690
    %v826 = vunpack.c.l.b16 %v691
    %v827 = vunpack.c.l.b16 %v692
    %v828 = vunpack.c.l.b16 %v693
    %v829 = vunpack.c.l.b16 %v694
    %v830 = vunpack.c.l.b16 %v695
    %v831 = vunpack.c.l.b16 %v696
    %v832 = vunpack.c.l.b16 %v697
    %v833 = vunpack.c.l.b16 %v698
    %v834 = vunpack.c.l.b16 %v699
    %v835 = vunpack.c.l.b16 %v700
    %v836 = vunpack.c.l.b16 %v701
    %v837 = vunpack.c.l.b16 %v702
    %v838 = vunpack.c.l.b16 %v703
    %v839 = vunpack.c.l.b16 %v704
    %v840 = vunpack.c.l.b16 %v705
    %v841 = vunpack.c.l.b16 %v706
    %v842 = vunpack.c.l.b16 %v707
    %v843 = vunpack.c.l.b16 %v708
    %v844 = vunpack.c.l.b16 %v709
    %v845 = vunpack.c.l.b16 %v710
    %v846 = vunpack.c.l.b16 %v711
    %v847 = vunpack.c.l.b16 %v712
    %v848 = vunpack.c.l.b16 %v713
    %v849 = vunpack.c.l.b16 %v714
    %v850 = vunpack.c.l.b16 %v715
    %v851 = vunpack.c.l.b16 %v716
    %v852 = vunpack.c.l.b16 %v717
    %v853 = vunpack.c.l.b16 %v718
    %v854 = vunpack.c.l.b16 %v719
    %v855 = vunpack.c.l.b16 %v720
    %v856 = vunpack.c.l.b16 %v721
    %v857 = vunpack.c.l.b16 %v722
    %v858 = vunpack.c.l.b16 %v723
    %v859 = vunpack.c.l.b16 %v724
    %v860 = vunpack.c.l.b16 %v725
    %v861 = vunpack.c.l.b16 %v726
    %v862 = vunpack.c.l.b16 %v727
    %v863 = vunpack.c.l.b16 %v728
    %v864 = vunpack.c.l.b16 %v729
    %v865 = vunpack.c.l.b16 %v730
    %v866 = vunpack.c.l.b16 %v731
    %v867 = vunpack.c.l.b16 %v732
    %v868 = vunpack.c.l.b16 %v733
    %v869 = vunpack.c.l.b16 %v734
    %v870 = vunpack.c.l.b16 %v735
    %v871 = vunpack.c.l.b16 %v736
    %v872 = vunpack.c.l.b16 %v737
    %v873 = vunpack.c.l.b16 %v738
    %v874 = vunpack.c.l.b16 %v739
    %v875 = vunpack.c.l.b16 %v740
    %v876 = vunpack.c.l.b16 %v741
    %v877 = vunpack.c.l.b16 %v742
    %v878 = vunpack.c.l.b16 %v743
    %v879 = vunpack.c.l.b16 %v744
    %v880 = vunpack.c.l.b16 %v745
    %v881 = vunpack.c.l.b16 %v746
    %v882 = vunpack.c.l.b16 %v747
    %v883 = vunpack.c.l.b16 %v748
    %v884 = vunpack.c.l.b16 %v749
    %v885 = vunpack.c.l.b16 %v750
    %v886 = vpack.c.b16 %v823, %v822
    %v887 = vpack.c.b16 %v825, %v824
    %v888 = vpack.c.b16 %v827, %v826
    %v889 = vpack.c.b16 %v829, %v828
    %v890 = vpack.c.b16 %v831, %v830
    %v891 = vpack.c.b16 %v833, %v832
    %v892 = vpack.c.b16 %v835, %v834
    %v893 = vpack.c.b16 %v837, %v836
    %v894 = vpack.c.b16 %v839, %v838
    %v895 = vpack.c.b16 %v841, %v840
    %v896 = vpack.c.b16 %v843, %v842
    %v897 = vpack.c.b16 %v845, %v844
    %v898 = vpack.c.b16 %v847, %v846
    %v899 = vpack.c.b16 %v849, %v848
    %v900 = vpack.c.b16 %v851, %v850
    %v901 = vpack.c.b16 %v853, %v852
    %v902 = vpack.c.b16 %v855, %v854
    %v903 = vpack.c.b16 %v857, %v856
    %v904 = vpack.c.b16 %v859, %v858
    %v905 = vpack.c.b16 %v861, %v860
    %v906 = vpack.c.b16 %v863, %v862
    %v907 = vpack.c.b16 %v865, %v864
    %v908 = vpack.c.b16 %v867, %v866
    %v909 = vpack.c.b16 %v869, %v868
    %v910 = vpack.c.b16 %v871, %v870
    %v911 = vpack.c.b16 %v873, %v872
    %v912 = vpack.c.b16 %v875, %v874
    %v913 = vpack.c.b16 %v877, %v876
    %v914 = vpack.c.b16 %v879, %v878
    %v915 = vpack.c.b16 %v881, %v880
    %v916 = vpack.c.b16 %v883, %v882
    %v917 = vpack.c.b16 %v885, %v884
    %950 = vmatprep.subr.bf16.mxu0 0
    %951 = vmatpush1.bf16.msra.mxu0 %v886
    %952 = vmatprep.subr.bf16.mxu0 0
    %953 = vmatpush1.bf16.msra.mxu0 %v887
    %954 = vmatprep.subr.bf16.mxu0 0
    %955 = vmatpush1.bf16.msra.mxu0 %v888
    %956 = vmatprep.subr.bf16.mxu0 0
    %957 = vmatpush1.bf16.msra.mxu0 %v889
    %958 = vmatprep.subr.bf16.mxu0 0
    %959 = vmatpush1.bf16.msra.mxu0 %v890
    %960 = vmatprep.subr.bf16.mxu0 0
    %961 = vmatpush1.bf16.msra.mxu0 %v891
    %962 = vmatprep.subr.bf16.mxu0 0
    %963 = vmatpush1.bf16.msra.mxu0 %v892
    %964 = vmatprep.subr.bf16.mxu0 0
    %965 = vmatpush1.bf16.msra.mxu0 %v893
    %966 = vmatprep.subr.bf16.mxu0 0
    %967 = vmatpush1.bf16.msra.mxu0 %v894
    %968 = vmatprep.subr.bf16.mxu0 0
    %969 = vmatpush1.bf16.msra.mxu0 %v895
    %970 = vmatprep.subr.bf16.mxu0 0
    %971 = vmatpush1.bf16.msra.mxu0 %v896
    %972 = vmatprep.subr.bf16.mxu0 0
    %973 = vmatpush1.bf16.msra.mxu0 %v897
    %974 = vmatprep.subr.bf16.mxu0 0
    %975 = vmatpush1.bf16.msra.mxu0 %v898
    %976 = vmatprep.subr.bf16.mxu0 0
    %977 = vmatpush1.bf16.msra.mxu0 %v899
    %978 = vmatprep.subr.bf16.mxu0 0
    %979 = vmatpush1.bf16.msra.mxu0 %v900
    %980 = vmatprep.subr.bf16.mxu0 0
    %981 = vmatpush1.bf16.msra.mxu0 %v901
    %982 = vmatprep.mubr.bf16.mxu0 %v684
    %983 = vmatmul.mubr.bf16.gmra.mrb[0].mxu0 %v683
    %v984 = vpop.f32.mrb[0].mxu0
    %v985 = vadd.f32 %v756, %v984
    %v986 = vpop.f32.mrb[0].mxu0
    %v987 = vpop.f32.mrb[0].mxu0
    %v988 = vpop.f32.mrb[0].mxu0
    %989 = vdwg.mxu0
    %990 = vmatprep.subr.bf16.mxu0 0
    %991 = vmatpush1.bf16.msra.mxu0 %v902
    %992 = vmatprep.subr.bf16.mxu0 0
    %993 = vmatpush1.bf16.msra.mxu0 %v903
    %994 = vmatprep.subr.bf16.mxu0 0
    %995 = vmatpush1.bf16.msra.mxu0 %v904
    %996 = vmatprep.subr.bf16.mxu0 0
    %997 = vmatpush1.bf16.msra.mxu0 %v905
    %998 = vmatprep.subr.bf16.mxu0 0
    %999 = vmatpush1.bf16.msra.mxu0 %v906
    %1000 = vmatprep.subr.bf16.mxu0 0
    %1001 = vmatpush1.bf16.msra.mxu0 %v907
    %1002 = vmatprep.subr.bf16.mxu0 0
    %1003 = vmatpush1.bf16.msra.mxu0 %v908
    %1004 = vmatprep.subr.bf16.mxu0 0
    %1005 = vmatpush1.bf16.msra.mxu0 %v909
    %1006 = vmatprep.subr.bf16.mxu0 0
    %1007 = vmatpush1.bf16.msra.mxu0 %v910
    %1008 = vmatprep.subr.bf16.mxu0 0
    %1009 = vmatpush1.bf16.msra.mxu0 %v911
    %1010 = vmatprep.subr.bf16.mxu0 0
    %1011 = vmatpush1.bf16.msra.mxu0 %v912
    %1012 = vmatprep.subr.bf16.mxu0 0
    %1013 = vmatpush1.bf16.msra.mxu0 %v913
    %1014 = vmatprep.subr.bf16.mxu0 0
    %1015 = vmatpush1.bf16.msra.mxu0 %v914
    %1016 = vmatprep.subr.bf16.mxu0 0
    %1017 = vmatpush1.bf16.msra.mxu0 %v915
    %1018 = vmatprep.subr.bf16.mxu0 0
    %1019 = vmatpush1.bf16.msra.mxu0 %v916
    %1020 = vmatprep.subr.bf16.mxu0 0
    %1021 = vmatpush1.bf16.msra.mxu0 %v917
    %1022 = vmatprep.mubr.bf16.mxu0 %v686
    %1023 = vmatmul.mubr.bf16.gmra.mrb[0].mxu0 %v685
    %v1024 = vpop.f32.mrb[0].mxu0
    %v1025 = vadd.f32 %v985, %v1024
    %v1026 = vpop.f32.mrb[0].mxu0
    %v1027 = vpop.f32.mrb[0].mxu0
    %v1028 = vpop.f32.mrb[0].mxu0
    %1029 = vdwg.mxu0
    %1030 = vst [vmem:[%s7] sm:$0xff] %v1025
    // Predicated region
    $region46: #{mlp_forward.1} parent=1 // pred_check
      _
    $region47: #{mlp_forward.1} parent=1 // pred_check_branch
      %1032 = sbr.rel (0) target = $region49
    $region48: #{mlp_forward.1} parent=1 // pred_region
      _
    $region49: #{mlp_forward.1} parent=1 // pred_fallthru
      _
    // Predicated region
    $region50: #{mlp_forward.1} parent=1 // pred_check
      _
    $region51: #{mlp_forward.1} parent=1 // pred_check_branch
      %1034 = sbr.rel (0) target = $region53
    $region52: #{mlp_forward.1} parent=1 // pred_region
      _
    $region53: #{mlp_forward.1} parent=1 // pred_fallthru
      _
    %1035 = vsyncpa [#allocation3], 1
    %1036 = vsyncpa [#allocation5], 1
    %1037 = vsyncpa [#allocation8], 1

</llo_original>
